<compile_context>
chip_gen: v7x
topology: tpu7x:2x2x1
jax: 0.10.0
libtpu: 0.0.40
codegen_flags: <defaults>
</compile_context>

<pallas_src>
import functools

import jax
import jax.numpy as jnp
from jax.experimental import pallas as pl
from jax.experimental.pallas import tpu as pltpu


def _cdiv(a, b):
    return (a + b - 1) // b


def _round_up(n, m):
    return _cdiv(n, m) * m


def predict_layer_kernel(x_ref, w1_ref, b1_ref, w2_ref, b2_ref, o_ref):
    # x_ref : (TR, fold*D)     `fold` consecutive batch rows packed per VMEM row
    # w1_ref: (fold*D, fold*H) block-diagonal replication of w1 (zeros off-diag)
    # b1_ref: (1, fold*H)      b1 tiled `fold` times
    # w2_ref: (fold*H, fold)   block-diagonal replication of w2
    # b2_ref: (1, fold)        b2 broadcast
    # o_ref : (TR, fold)       lane k of row r = prediction for batch row fold*r + k
    h = jnp.dot(x_ref[...], w1_ref[...], preferred_element_type=jnp.float32)
    h = jnp.maximum(h + b1_ref[...], 0.0)   # ReLU; Dropout(p=0) is identity
    out = jnp.dot(h, w2_ref[...], preferred_element_type=jnp.float32) + b2_ref[...]
    o_ref[...] = out.astype(o_ref.dtype)


@functools.partial(jax.jit, static_argnames=("tile_b",))
def predict_layer(x, w1, b1, w2, b2, *, tile_b=16384):
    """relu(x @ w1 + b1) @ w2 + b2, weights stored [in, out]. Returns (B, 1)."""
    B, D = x.shape
    H = w1.shape[1]
    assert w1.shape == (D, H)
    assert w2.shape == (H, 1)

    # Fold factor: pack `fold` batch rows into one 128-lane row (free reshape of
    # a contiguous array) so x / h are lane-dense. Fallback fold=1 otherwise.
    if D <= 128 and 128 % D == 0 and B % (128 // D) == 0:
        fold = 128 // D
    else:
        fold = 1

    R = B // fold                    # folded rows
    DF, HF = fold * D, fold * H

    # Block-diagonally replicated weights / tiled biases (tiny, negligible cost).
    eye = jnp.eye(fold, dtype=w1.dtype)
    w1_bd = jnp.kron(eye, w1)                         # (DF, HF)
    w2_bd = jnp.kron(eye, w2.reshape(H, 1))           # (HF, fold)
    b1_t = jnp.tile(b1.reshape(1, H), (1, fold))      # (1, HF)
    b2_t = jnp.tile(b2.reshape(1, 1), (1, fold))      # (1, fold)

    x_rs = x.reshape(R, DF)          # free under jit (row-major contiguous)

    # Batch tile (in folded rows):
    #  * big enough to amortize the ~0.35 us per-grid-step overhead,
    #  * capped so one x block is <= ~8 MiB of VMEM (fits v5e 16 MiB default
    #    scoped VMEM and v7x 64 MiB physical with double buffering + h/out),
    #  * at most ceil(R/2) so large batches give >= 2 steps for megacore (v7x).
    row_bytes = _round_up(DF, 128) * x.dtype.itemsize
    vmem_cap_rows = max(8, ((8 * 1024 * 1024) // row_bytes) // 8 * 8)
    want_rows = max(8, _round_up(_cdiv(max(tile_b, 1024), fold), 8))
    tile_rows = min(want_rows, vmem_cap_rows, _round_up(_cdiv(R, 2), 8))
    if tile_rows >= R:
        tile_rows = R                # single block == full array (always legal)
    num_tiles = _cdiv(R, tile_rows)  # ragged last block: OOB x rows are garbage
                                     # but only feed OOB output rows, which
                                     # Pallas masks on writeback.

    out = pl.pallas_call(
        predict_layer_kernel,
        out_shape=jax.ShapeDtypeStruct((R, fold), jnp.float32),
        grid_spec=pltpu.PrefetchScalarGridSpec(
            num_scalar_prefetch=0,
            grid=(num_tiles,),
            in_specs=[
                pl.BlockSpec((tile_rows, DF), lambda i: (i, 0)),   # x (streamed)
                pl.BlockSpec((DF, HF), lambda i: (0, 0)),          # w1 (resident)
                pl.BlockSpec((1, HF), lambda i: (0, 0)),           # b1 (resident)
                pl.BlockSpec((HF, fold), lambda i: (0, 0)),        # w2 (resident)
                pl.BlockSpec((1, fold), lambda i: (0, 0)),         # b2 (resident)
            ],
            out_specs=pl.BlockSpec((tile_rows, fold), lambda i: (i, 0)),
        ),
        compiler_params=pltpu.CompilerParams(
            dimension_semantics=("parallel",),
            vmem_limit_bytes=48 * 1024 * 1024,
        ),
        cost_estimate=pl.CostEstimate(
            flops=2 * B * H * (D + 1),
            transcendentals=0,
            bytes_accessed=B * D * x.dtype.itemsize + B * 4
            + (DF * HF + HF + HF * fold + fold) * 4,
        ),
    )(x_rs, w1_bd, b1_t, w2_bd, b2_t)

    # (R, fold) -> (B, 1): free row-major reshape (padded rows never existed).
    return out.reshape(B, 1)


if __name__ == "__main__":
    embedding_dim = 32
    batch = 16

    key = jax.random.PRNGKey(0)
    kx, kw1, kb1, kw2, kb2, kx2, kx3 = jax.random.split(key, 7)

    # Deterministic synthetic parameters (shapes per nn.Linear(embedding_dim, 8)
    # and nn.Linear(8, 1), stored [in, out]).
    x = jax.random.normal(kx, (batch, embedding_dim), dtype=jnp.float32)
    bound1 = 1.0 / (embedding_dim ** 0.5)
    w1 = jax.random.uniform(kw1, (embedding_dim, 8), minval=-bound1, maxval=bound1,
                            dtype=jnp.float32)
    b1 = jax.random.uniform(kb1, (1, 8), minval=-bound1, maxval=bound1,
                            dtype=jnp.float32)
    bound2 = 1.0 / (8 ** 0.5)
    w2 = jax.random.uniform(kw2, (8, 1), minval=-bound2, maxval=bound2,
                            dtype=jnp.float32)
    b2 = jax.random.uniform(kb2, (1, 1), minval=-bound2, maxval=bound2,
                            dtype=jnp.float32)

    def ref_fn(xx):
        return jnp.maximum(xx @ w1 + b1, 0.0) @ w2 + b2

    # Small batch (single grid step, folded lane-dense path).
    out = jax.block_until_ready(predict_layer(x, w1, b1, w2, b2))
    assert out.shape == (batch, 1)
    assert jnp.allclose(out, ref_fn(x), atol=1e-5, rtol=1e-5), "mismatch vs reference"

    # Larger batch: 2 grid steps (megacore-shardable), no wrapper-side padding.
    batch2 = 2176
    x2 = jax.random.normal(kx2, (batch2, embedding_dim), dtype=jnp.float32)
    out2 = jax.block_until_ready(predict_layer(x2, w1, b1, w2, b2))
    assert out2.shape == (batch2, 1)
    assert jnp.allclose(out2, ref_fn(x2), atol=1e-5, rtol=1e-5), \
        "mismatch vs reference (large batch)"

    # Batch not a multiple of the fold factor: fold=1 fallback + ragged last block.
    batch3 = 37
    x3 = jax.random.normal(kx3, (batch3, embedding_dim), dtype=jnp.float32)
    out3 = jax.block_until_ready(predict_layer(x3, w1, b1, w2, b2))
    assert out3.shape == (batch3, 1)
    assert jnp.allclose(out3, ref_fn(x3), atol=1e-5, rtol=1e-5), \
        "mismatch vs reference (ragged batch)"

    print("KERNEL_OK")
</pallas_src>

<mosaic_0001>
module attributes {stable_mosaic.version = 11 : i64} {
  func.func @predict_layer_kernel(%arg0: i32, %arg1: memref<4x128xf32, #tpu.memory_space<vmem>>, %arg2: memref<128x32xf32, #tpu.memory_space<vmem>>, %arg3: memref<1x32xf32, #tpu.memory_space<vmem>>, %arg4: memref<32x4xf32, #tpu.memory_space<vmem>>, %arg5: memref<1x4xf32, #tpu.memory_space<vmem>>, %arg6: memref<4x4xf32, #tpu.memory_space<vmem>>) attributes {dimension_semantics = [#tpu.dimension_semantics<parallel>], iteration_bounds = array<i64: 1>, scalar_prefetch = 0 : i64, scratch_operands = 0 : i64, tpu.core_type = #tpu.core_type<tc>, window_params = [{transform_indices = @transform_0, window_bounds = array<i64: 4, 128>}, {pipeline_mode = #tpu.pipeline_mode<synchronous>, transform_indices = @transform_1, window_bounds = array<i64: 128, 32>}, {pipeline_mode = #tpu.pipeline_mode<synchronous>, transform_indices = @transform_2, window_bounds = array<i64: 1, 32>}, {pipeline_mode = #tpu.pipeline_mode<synchronous>, transform_indices = @transform_3, window_bounds = array<i64: 32, 4>}, {pipeline_mode = #tpu.pipeline_mode<synchronous>, transform_indices = @transform_4, window_bounds = array<i64: 1, 4>}, {transform_indices = @transform_5, window_bounds = array<i64: 4, 4>}]} {
    %c0 = arith.constant 0 : index
    %c0_0 = arith.constant 0 : index
    %0 = vector.load %arg1[%c0, %c0_0] : memref<4x128xf32, #tpu.memory_space<vmem>>, vector<4x128xf32>
    %c0_1 = arith.constant 0 : index
    %c0_2 = arith.constant 0 : index
    %1 = vector.load %arg2[%c0_1, %c0_2] : memref<128x32xf32, #tpu.memory_space<vmem>>, vector<128x32xf32>
    %cst = arith.constant dense<0.000000e+00> : vector<4x32xf32>
    %2 = tpu.matmul %0, %1, %cst {dimension_numbers = #tpu.dot_dimension_numbers<[1], [0], [0], [1], [0, 0, 1, 1], [], []>} : vector<4x128xf32>, vector<128x32xf32>, vector<4x32xf32> -> vector<4x32xf32>
    %c0_3 = arith.constant 0 : index
    %c0_4 = arith.constant 0 : index
    %3 = vector.load %arg3[%c0_3, %c0_4] : memref<1x32xf32, #tpu.memory_space<vmem>>, vector<1x32xf32>
    %4 = vector.broadcast %3 : vector<1x32xf32> to vector<4x32xf32>
    %5 = arith.addf %2, %4 : vector<4x32xf32>
    %cst_5 = arith.constant 0.000000e+00 : f32
    %6 = vector.broadcast %cst_5 : f32 to vector<4x32xf32>
    %7 = arith.maximumf %5, %6 : vector<4x32xf32>
    %c0_6 = arith.constant 0 : index
    %c0_7 = arith.constant 0 : index
    %8 = vector.load %arg4[%c0_6, %c0_7] : memref<32x4xf32, #tpu.memory_space<vmem>>, vector<32x4xf32>
    %cst_8 = arith.constant dense<0.000000e+00> : vector<4x4xf32>
    %9 = tpu.matmul %7, %8, %cst_8 {dimension_numbers = #tpu.dot_dimension_numbers<[1], [0], [0], [1], [0, 0, 1, 1], [], []>} : vector<4x32xf32>, vector<32x4xf32>, vector<4x4xf32> -> vector<4x4xf32>
    %c0_9 = arith.constant 0 : index
    %c0_10 = arith.constant 0 : index
    %10 = vector.load %arg5[%c0_9, %c0_10] : memref<1x4xf32, #tpu.memory_space<vmem>>, vector<1x4xf32>
    %11 = vector.broadcast %10 : vector<1x4xf32> to vector<4x4xf32>
    %12 = arith.addf %9, %11 : vector<4x4xf32>
    %c0_11 = arith.constant 0 : index
    %c0_12 = arith.constant 0 : index
    %13 = vector.load %arg6[%c0_11, %c0_12] : memref<4x4xf32, #tpu.memory_space<vmem>>, vector<4x4xf32>
    tpu.vector_store %arg6[%c0_11, %c0_12], %12 {strides = array<i32>} : memref<4x4xf32, #tpu.memory_space<vmem>>, vector<4x4xf32>,
    return
  }
  func.func @transform_0(%arg0: i32) -> (i32, i32) {
    %c0_i32 = arith.constant 0 : i32
    %c0_i32_0 = arith.constant 0 : i32
    return %arg0, %c0_i32 : i32, i32
  }
  func.func @transform_1(%arg0: i32) -> (i32, i32) {
    %c0_i32 = arith.constant 0 : i32
    %c0_i32_0 = arith.constant 0 : i32
    %c0_i32_1 = arith.constant 0 : i32
    return %c0_i32, %c0_i32_0 : i32, i32
  }
  func.func @transform_2(%arg0: i32) -> (i32, i32) {
    %c0_i32 = arith.constant 0 : i32
    %c0_i32_0 = arith.constant 0 : i32
    %c0_i32_1 = arith.constant 0 : i32
    return %c0_i32, %c0_i32_0 : i32, i32
  }
  func.func @transform_3(%arg0: i32) -> (i32, i32) {
    %c0_i32 = arith.constant 0 : i32
    %c0_i32_0 = arith.constant 0 : i32
    %c0_i32_1 = arith.constant 0 : i32
    return %c0_i32, %c0_i32_0 : i32, i32
  }
  func.func @transform_4(%arg0: i32) -> (i32, i32) {
    %c0_i32 = arith.constant 0 : i32
    %c0_i32_0 = arith.constant 0 : i32
    %c0_i32_1 = arith.constant 0 : i32
    return %c0_i32, %c0_i32_0 : i32, i32
  }
  func.func @transform_5(%arg0: i32) -> (i32, i32) {
    %c0_i32 = arith.constant 0 : i32
    %c0_i32_0 = arith.constant 0 : i32
    return %arg0, %c0_i32 : i32, i32
  }
}

</mosaic_0001>

<llo_original>
// kernel: predict_layer.1
$region0: #{predict_layer.1}
  #allocation0 [shape = 'u32[]', space=smem, size = 0x4, offset = 0x4, fixed_abs, tag = 'smem constant byte address 0x4 - core index']
  #allocation1 [shape = 'u32[144,128]{1,0:T(1,128)}', space=vmem, size = 0x12000, scoped, tag = 'internal scratch']
  %s0 = inlined_call_operand.vmem [shape: f32[4,128], index: 0, kind: input, shape index: {}]
  %s1 = inlined_call_operand.vmem [shape: f32[128,32], index: 1, kind: input, shape index: {}]
  %s2 = inlined_call_operand.vmem [shape: f32[1,32], index: 2, kind: input, shape index: {}]
  %s3 = inlined_call_operand.vmem [shape: f32[32,4], index: 3, kind: input, shape index: {}]
  %s4 = inlined_call_operand.vmem [shape: f32[1,4], index: 4, kind: input, shape index: {}]
  %s5 = inlined_call_operand.vmem [shape: f32[4,4], index: 5, kind: output, shape index: {}]
  %s6 = sld [smem:[#allocation0]]
  $region30: #{predict_layer.1} parent=0
    _
  %s8 = ssub.s32 1, %s6
  %s9 = scalar_select 0, %s8, %s6
  // Predicated region
  $region2: #{predict_layer.1} parent=0 // pred_check
    _
  $region3: #{predict_layer.1} parent=0 // pred_check_branch
    %11 = sbr.rel (0) target = $region5
  $region4: #{predict_layer.1} parent=0 // pred_region
    _
  $region5: #{predict_layer.1} parent=0 // pred_fallthru
    _
  // Predicated region
  $region6: #{predict_layer.1} parent=0 // pred_check
    _
  $region7: #{predict_layer.1} parent=0 // pred_check_branch
    %13 = sbr.rel (0) target = $region9
  $region8: #{predict_layer.1} parent=0 // pred_region
    _
  $region9: #{predict_layer.1} parent=0 // pred_fallthru
    _
  // Predicated region
  $region10: #{predict_layer.1} parent=0 // pred_check
    _
  $region11: #{predict_layer.1} parent=0 // pred_check_branch
    %15 = sbr.rel (0) target = $region13
  $region12: #{predict_layer.1} parent=0 // pred_region
    _
  $region13: #{predict_layer.1} parent=0 // pred_fallthru
    _
  // Predicated region
  $region14: #{predict_layer.1} parent=0 // pred_check
    _
  $region15: #{predict_layer.1} parent=0 // pred_check_branch
    %17 = sbr.rel (0) target = $region17
  $region16: #{predict_layer.1} parent=0 // pred_region
    _
  $region17: #{predict_layer.1} parent=0 // pred_fallthru
    _
  // Predicated region
  $region18: #{predict_layer.1} parent=0 // pred_check
    _
  $region19: #{predict_layer.1} parent=0 // pred_check_branch
    %19 = sbr.rel (0) target = $region21
  $region20: #{predict_layer.1} parent=0 // pred_region
    _
  $region21: #{predict_layer.1} parent=0 // pred_fallthru
    _
  %v20 = vld [vmem:[%s0] sm:$0xf]
  %v21 = vld [vmem:[%s1] sm:$0xff]
  %v22 = vld [vmem:[%s1 + $0x8] sm:$0xff]
  %v23 = vld [vmem:[%s1 + $0x10] sm:$0xff]
  %v24 = vld [vmem:[%s1 + $0x18] sm:$0xff]
  %v25 = vld [vmem:[%s1 + $0x20] sm:$0xff]
  %v26 = vld [vmem:[%s1 + $0x28] sm:$0xff]
  %v27 = vld [vmem:[%s1 + $0x30] sm:$0xff]
  %v28 = vld [vmem:[%s1 + $0x38] sm:$0xff]
  %v29 = vld [vmem:[%s1 + $0x40] sm:$0xff]
  %v30 = vld [vmem:[%s1 + $0x48] sm:$0xff]
  %v31 = vld [vmem:[%s1 + $0x50] sm:$0xff]
  %v32 = vld [vmem:[%s1 + $0x58] sm:$0xff]
  %v33 = vld [vmem:[%s1 + $0x60] sm:$0xff]
  %v34 = vld [vmem:[%s1 + $0x68] sm:$0xff]
  %v35 = vld [vmem:[%s1 + $0x70] sm:$0xff]
  %v36 = vld [vmem:[%s1 + $0x78] sm:$0xff]
  %v37 = vld [vmem:[%s2] sm:$0x1]
  %v39 = vlaneseq
  %v40 = vshrl.u32 %v39, 7
  %v41 = vsub.s32 0, %v40
  %v42 = vrot.slane %v37, %v41
  %44 = vmatprep.subr.mxu0 0.0
  %45 = vmatpush1.msra.mxu0 %v21
  %46 = vmatprep.subr.mxu0 0.0
  %47 = vmatpush1.msra.mxu0 %v22
  %48 = vmatprep.subr.mxu0 0.0
  %49 = vmatpush1.msra.mxu0 %v23
  %50 = vmatprep.subr.mxu0 0.0
  %51 = vmatpush1.msra.mxu0 %v24
  %52 = vmatprep.subr.mxu0 0.0
  %53 = vmatpush1.msra.mxu0 %v25
  %54 = vmatprep.subr.mxu0 0.0
  %55 = vmatpush1.msra.mxu0 %v26
  %56 = vmatprep.subr.mxu0 0.0
  %57 = vmatpush1.msra.mxu0 %v27
  %58 = vmatprep.subr.mxu0 0.0
  %59 = vmatpush1.msra.mxu0 %v28
  %60 = vmatprep.subr.mxu0 0.0
  %61 = vmatpush1.msra.mxu0 %v29
  %62 = vmatprep.subr.mxu0 0.0
  %63 = vmatpush1.msra.mxu0 %v30
  %64 = vmatprep.subr.mxu0 0.0
  %65 = vmatpush1.msra.mxu0 %v31
  %66 = vmatprep.subr.mxu0 0.0
  %67 = vmatpush1.msra.mxu0 %v32
  %68 = vmatprep.subr.mxu0 0.0
  %69 = vmatpush1.msra.mxu0 %v33
  %70 = vmatprep.subr.mxu0 0.0
  %71 = vmatpush1.msra.mxu0 %v34
  %72 = vmatprep.subr.mxu0 0.0
  %73 = vmatpush1.msra.mxu0 %v35
  %74 = vmatprep.subr.mxu0 0.0
  %75 = vmatpush1.msra.mxu0 %v36
  %76 = vmatprep.subr.mxu0 0.0
  %77 = vmatpush1.msra.mxu0 0.0
  %78 = vmatprep.subr.mxu0 0.0
  %79 = vmatpush1.msra.mxu0 0.0
  %80 = vmatprep.subr.mxu0 0.0
  %81 = vmatpush1.msra.mxu0 0.0
  %82 = vmatprep.subr.mxu0 0.0
  %83 = vmatpush1.msra.mxu0 0.0
  %84 = vmatprep.subr.mxu0 0.0
  %85 = vmatpush1.msra.mxu0 0.0
  %86 = vmatprep.subr.mxu0 0.0
  %87 = vmatpush1.msra.mxu0 0.0
  %88 = vmatprep.subr.mxu0 0.0
  %89 = vmatpush1.msra.mxu0 0.0
  %90 = vmatprep.subr.mxu0 0.0
  %91 = vmatpush1.msra.mxu0 0.0
  %92 = vmatprep.subr.mxu0 0.0
  %93 = vmatpush1.msra.mxu0 0.0
  %94 = vmatprep.subr.mxu0 0.0
  %95 = vmatpush1.msra.mxu0 0.0
  %96 = vmatprep.subr.mxu0 0.0
  %97 = vmatpush1.msra.mxu0 0.0
  %98 = vmatprep.subr.mxu0 0.0
  %99 = vmatpush1.msra.mxu0 0.0
  %100 = vmatprep.subr.mxu0 0.0
  %101 = vmatpush1.msra.mxu0 0.0
  %102 = vmatprep.subr.mxu0 0.0
  %103 = vmatpush1.msra.mxu0 0.0
  %104 = vmatprep.subr.mxu0 0.0
  %105 = vmatpush1.msra.mxu0 0.0
  %106 = vmatprep.subr.mxu0 0.0
  %107 = vmatpush1.msra.mxu0 0.0
  %108 = vmatprep.mubr.f32.mxu0 0.0
  %109 = vmatmul.mubr.f32.gmra.mrb[0].mxu0 %v20
  %v110 = vpop.f32.mrb[0].mxu0
  %v111 = vadd.f32 %v42, %v110
  %v112 = vpop.f32.mrb[0].mxu0
  %113 = vdwg.mxu0
  %v114 = vmax.f32 %v111, 0.0
  %v115 = vld [vmem:[%s3] sm:$0xff]
  %v116 = vld [vmem:[%s3 + $0x8] sm:$0xff]
  %v117 = vld [vmem:[%s3 + $0x10] sm:$0xff]
  %v118 = vld [vmem:[%s3 + $0x18] sm:$0xff]
  %v119 = vld [vmem:[%s4] sm:$0x1]
  %v121 = vlaneseq
  %v122 = vshrl.u32 %v121, 7
  %v123 = vsub.s32 0, %v122
  %v124 = vrot.slane %v119, %v123
  %vm126 = vcmask 261120
  %v128 = vsel %vm126, %v114, 0
  %130 = vmatprep.subr.mxu0 0.0
  %131 = vmatpush1.msra.mxu0 %v115
  %132 = vmatprep.subr.mxu0 0.0
  %133 = vmatpush1.msra.mxu0 %v116
  %134 = vmatprep.subr.mxu0 0.0
  %135 = vmatpush1.msra.mxu0 %v117
  %136 = vmatprep.subr.mxu0 0.0
  %137 = vmatpush1.msra.mxu0 %v118
  %138 = vmatprep.subr.mxu0 0.0
  %139 = vmatpush1.msra.mxu0 0.0
  %140 = vmatprep.subr.mxu0 0.0
  %141 = vmatpush1.msra.mxu0 0.0
  %142 = vmatprep.subr.mxu0 0.0
  %143 = vmatpush1.msra.mxu0 0.0
  %144 = vmatprep.subr.mxu0 0.0
  %145 = vmatpush1.msra.mxu0 0.0
  %146 = vmatprep.subr.mxu0 0.0
  %147 = vmatpush1.msra.mxu0 0.0
  %148 = vmatprep.subr.mxu0 0.0
  %149 = vmatpush1.msra.mxu0 0.0
  %150 = vmatprep.subr.mxu0 0.0
  %151 = vmatpush1.msra.mxu0 0.0
  %152 = vmatprep.subr.mxu0 0.0
  %153 = vmatpush1.msra.mxu0 0.0
  %154 = vmatprep.subr.mxu0 0.0
  %155 = vmatpush1.msra.mxu0 0.0
  %156 = vmatprep.subr.mxu0 0.0
  %157 = vmatpush1.msra.mxu0 0.0
  %158 = vmatprep.subr.mxu0 0.0
  %159 = vmatpush1.msra.mxu0 0.0
  %160 = vmatprep.subr.mxu0 0.0
  %161 = vmatpush1.msra.mxu0 0.0
  %162 = vmatprep.subr.mxu0 0.0
  %163 = vmatpush1.msra.mxu0 0.0
  %164 = vmatprep.subr.mxu0 0.0
  %165 = vmatpush1.msra.mxu0 0.0
  %166 = vmatprep.subr.mxu0 0.0
  %167 = vmatpush1.msra.mxu0 0.0
  %168 = vmatprep.subr.mxu0 0.0
  %169 = vmatpush1.msra.mxu0 0.0
  %170 = vmatprep.subr.mxu0 0.0
  %171 = vmatpush1.msra.mxu0 0.0
  %172 = vmatprep.subr.mxu0 0.0
  %173 = vmatpush1.msra.mxu0 0.0
  %174 = vmatprep.subr.mxu0 0.0
  %175 = vmatpush1.msra.mxu0 0.0
  %176 = vmatprep.subr.mxu0 0.0
  %177 = vmatpush1.msra.mxu0 0.0
  %178 = vmatprep.subr.mxu0 0.0
  %179 = vmatpush1.msra.mxu0 0.0
  %180 = vmatprep.subr.mxu0 0.0
  %181 = vmatpush1.msra.mxu0 0.0
  %182 = vmatprep.subr.mxu0 0.0
  %183 = vmatpush1.msra.mxu0 0.0
  %184 = vmatprep.subr.mxu0 0.0
  %185 = vmatpush1.msra.mxu0 0.0
  %186 = vmatprep.subr.mxu0 0.0
  %187 = vmatpush1.msra.mxu0 0.0
  %188 = vmatprep.subr.mxu0 0.0
  %189 = vmatpush1.msra.mxu0 0.0
  %190 = vmatprep.subr.mxu0 0.0
  %191 = vmatpush1.msra.mxu0 0.0
  %192 = vmatprep.subr.mxu0 0.0
  %193 = vmatpush1.msra.mxu0 0.0
  %194 = vmatprep.mubr.f32.mxu0 0.0
  %195 = vmatmul.mubr.f32.gmra.mrb[0].mxu0 %v128
  %v196 = vpop.f32.mrb[0].mxu0
  %v197 = vadd.f32 %v124, %v196
  %v198 = vpop.f32.mrb[0].mxu0
  %199 = vdwg.mxu0
  %vm200 = vcmask 27648
  %201 = vst.msk [vmem:[%s5] sm:$0xf] %vm200, %v197
  // Predicated region
  $region22: #{predict_layer.1} parent=0 // pred_check
    _
  $region23: #{predict_layer.1} parent=0 // pred_check_branch
    %203 = sbr.rel (0) target = $region25
  $region24: #{predict_layer.1} parent=0 // pred_region
    _
  $region25: #{predict_layer.1} parent=0 // pred_fallthru
    _
  // Predicated region
  $region26: #{predict_layer.1} parent=0 // pred_check
    _
  $region27: #{predict_layer.1} parent=0 // pred_check_branch
    %205 = sbr.rel (0) target = $region29
  $region28: #{predict_layer.1} parent=0 // pred_region
    _
  $region29: #{predict_layer.1} parent=0 // pred_fallthru
    _

</llo_original>
